<compile_context>
chip_gen: v7x
topology: tpu7x:2x2x1
jax: 0.10.0
libtpu: 0.0.40
codegen_flags: <defaults>
</compile_context>

<pallas_src>
import functools
import math

import jax
import jax.numpy as jnp
from jax.experimental import pallas as pl
from jax.experimental.pallas import tpu as pltpu


def _channel_attention_kernel(x_ref, w_ref, b_ref, o_ref, *, inv_hw):
    """One block of Bn batch elements per grid step.

    x_ref: (Bn, C, HW)  activations; channels on sublanes, flat spatial on lanes
    w_ref: (C, C)       1x1-conv weight, w[o, c]
    b_ref: (1, C)       1x1-conv bias
    o_ref: (Bn, C, HW)  output = x * sigmoid(W @ mean_hw(x) + b)
    """
    x = x_ref[...]                                            # native dtype

    # Global average pool: f32-accumulated lane reduction, divide by true H*W.
    pooled = jnp.sum(x, axis=-1, dtype=jnp.float32) * inv_hw  # (Bn, C) f32

    # 1x1 conv on the pooled vectors via VPU broadcast-FMA + lane reduce.
    # att_pre[b, o] = sum_c pooled[b, c] * w[o, c] + bias[o]
    att_pre = jnp.sum(pooled[:, None, :] * w_ref[...][None, :, :],
                      axis=-1) + b_ref[...]                   # (Bn, C) f32
    att = jax.nn.sigmoid(att_pre)                             # (Bn, C) f32

    # Per-channel rescale in the native dtype, broadcast along the lane axis.
    o_ref[...] = (x * att[:, :, None].astype(x.dtype)).astype(o_ref.dtype)


def _pick_batch_block(n, per_elem_bytes, budget_bytes=12 << 20):
    """Largest divisor of n in {8,4,2,1} whose slab stays under the budget."""
    for cand in (8, 4, 2, 1):
        if n % cand == 0 and cand * per_elem_bytes <= budget_bytes:
            return cand
    return 1


def channel_attention_forward(x_nchw, fc_weight, fc_bias):
    """Equivalent of ChannelAttention.forward(x).  x: (N, C, H, W) NCHW."""
    N, C, H, W = x_nchw.shape
    C2, C1, kh, kw = fc_weight.shape
    assert C2 == C and C1 == C and kh == 1 and kw == 1, "fc must be 1x1 CxC conv"

    HW = H * W
    # Free reshape (contiguous): spatial flattened onto the lane axis.
    x_flat = x_nchw.reshape(N, C, HW)
    w2d = fc_weight.reshape(C, C).astype(jnp.float32)         # w[o, c]
    b2d = fc_bias.astype(jnp.float32).reshape(1, C)

    per_elem_bytes = C * HW * jnp.dtype(x_nchw.dtype).itemsize
    Bn = _pick_batch_block(N, per_elem_bytes)
    grid = (N // Bn,)

    # Double-buffered input + output blocks, plus small weight/bias buffers.
    needed = 4 * Bn * per_elem_bytes + 4 * (C * C + C) * 4 + (1 << 20)
    vmem_limit = int(min(max(needed, 32 << 20), 128 << 20))

    kernel = functools.partial(_channel_attention_kernel, inv_hw=1.0 / HW)

    out = pl.pallas_call(
        kernel,
        out_shape=jax.ShapeDtypeStruct((N, C, HW), x_nchw.dtype),
        grid_spec=pltpu.PrefetchScalarGridSpec(
            num_scalar_prefetch=0,
            grid=grid,
            in_specs=[
                pl.BlockSpec((Bn, C, HW), lambda n: (n, 0, 0)),
                pl.BlockSpec((C, C), lambda n: (0, 0)),
                pl.BlockSpec((1, C), lambda n: (0, 0)),
            ],
            out_specs=pl.BlockSpec((Bn, C, HW), lambda n: (n, 0, 0)),
        ),
        compiler_params=pltpu.CompilerParams(
            dimension_semantics=("parallel",),
            vmem_limit_bytes=vmem_limit),
    )(x_flat, w2d, b2d)

    return out.reshape(N, C, H, W)


def _reference(x, fc_weight, fc_bias):
    N, C, H, W = x.shape
    pooled = jnp.mean(x.astype(jnp.float32), axis=(2, 3))             # (N, C)
    att = pooled @ fc_weight.reshape(C, C).astype(jnp.float32).T + fc_bias
    att = jax.nn.sigmoid(att)                                         # (N, C)
    return x * att[:, :, None, None].astype(x.dtype)


if __name__ == "__main__":
    # ChannelAttention(channels=4) applied to x of shape (2, 4, 16, 16) (NCHW)
    key = jax.random.PRNGKey(0)
    kx, kw, kb = jax.random.split(key, 3)

    N, C, H, W = 2, 4, 16, 16
    x = jax.random.normal(kx, (N, C, H, W), dtype=jnp.float32)

    # Deterministic Conv2d(1x1)-style init: uniform(-1/sqrt(fan_in), +...).
    fan_in = C * 1 * 1
    bound = 1.0 / math.sqrt(fan_in)
    fc_weight = jax.random.uniform(kw, (C, C, 1, 1), jnp.float32, -bound, bound)
    fc_bias = jax.random.uniform(kb, (C,), jnp.float32, -bound, bound)

    out = channel_attention_forward(x, fc_weight, fc_bias)
    out = jax.block_until_ready(out)

    ref = _reference(x, fc_weight, fc_bias)
    assert out.shape == (N, C, H, W), out.shape
    assert jnp.allclose(out, ref, atol=1e-5, rtol=1e-5), \
        float(jnp.max(jnp.abs(out - ref)))

    print("KERNEL_OK")
</pallas_src>

<mosaic_0001>
module attributes {stable_mosaic.version = 11 : i64} {
  func.func @_channel_attention_kernel(%arg0: i32, %arg1: memref<2x4x256xf32, #tpu.memory_space<vmem>>, %arg2: memref<4x4xf32, #tpu.memory_space<vmem>>, %arg3: memref<1x4xf32, #tpu.memory_space<vmem>>, %arg4: memref<2x4x256xf32, #tpu.memory_space<vmem>>) attributes {dimension_semantics = [#tpu.dimension_semantics<parallel>], iteration_bounds = array<i64: 1>, scalar_prefetch = 0 : i64, scratch_operands = 0 : i64, tpu.core_type = #tpu.core_type<tc>, window_params = [{transform_indices = @transform_0, window_bounds = array<i64: 2, 4, 256>}, {pipeline_mode = #tpu.pipeline_mode<synchronous>, transform_indices = @transform_1, window_bounds = array<i64: 4, 4>}, {pipeline_mode = #tpu.pipeline_mode<synchronous>, transform_indices = @transform_2, window_bounds = array<i64: 1, 4>}, {transform_indices = @transform_3, window_bounds = array<i64: 2, 4, 256>}]} {
    %c0 = arith.constant 0 : index
    %c0_0 = arith.constant 0 : index
    %c0_1 = arith.constant 0 : index
    %0 = vector.load %arg1[%c0, %c0_0, %c0_1] : memref<2x4x256xf32, #tpu.memory_space<vmem>>, vector<2x4x256xf32>
    %cst = arith.constant dense<0.000000e+00> : vector<2x4xf32>
    %1 = vector.multi_reduction <add>, %0, %cst [2] : vector<2x4x256xf32> to vector<2x4xf32>
    %cst_2 = arith.constant 3.906250e-03 : f32
    %2 = vector.broadcast %cst_2 : f32 to vector<2x4xf32>
    %3 = arith.mulf %1, %2 : vector<2x4xf32>
    %4 = vector.shape_cast %3 : vector<2x4xf32> to vector<2x1x4xf32>
    %c0_3 = arith.constant 0 : index
    %c0_4 = arith.constant 0 : index
    %5 = vector.load %arg2[%c0_3, %c0_4] : memref<4x4xf32, #tpu.memory_space<vmem>>, vector<4x4xf32>
    %6 = vector.shape_cast %5 : vector<4x4xf32> to vector<1x4x4xf32>
    %7 = vector.broadcast %4 : vector<2x1x4xf32> to vector<2x4x4xf32>
    %8 = vector.broadcast %6 : vector<1x4x4xf32> to vector<2x4x4xf32>
    %9 = arith.mulf %7, %8 : vector<2x4x4xf32>
    %cst_5 = arith.constant dense<0.000000e+00> : vector<2x4xf32>
    %10 = vector.multi_reduction <add>, %9, %cst_5 [2] : vector<2x4x4xf32> to vector<2x4xf32>
    %c0_6 = arith.constant 0 : index
    %c0_7 = arith.constant 0 : index
    %11 = vector.load %arg3[%c0_6, %c0_7] : memref<1x4xf32, #tpu.memory_space<vmem>>, vector<1x4xf32>
    %12 = vector.broadcast %11 : vector<1x4xf32> to vector<2x4xf32>
    %13 = arith.addf %10, %12 : vector<2x4xf32>
    %14 = arith.negf %13 : vector<2x4xf32>
    %15 = math.exp %14 : vector<2x4xf32>
    %cst_8 = arith.constant 1.000000e+00 : f32
    %16 = vector.broadcast %cst_8 : f32 to vector<2x4xf32>
    %17 = arith.addf %16, %15 : vector<2x4xf32>
    %18 = arith.divf %16, %17 : vector<2x4xf32>
    %19 = vector.shape_cast %18 : vector<2x4xf32> to vector<2x4x1xf32>
    %20 = vector.broadcast %19 : vector<2x4x1xf32> to vector<2x4x256xf32>
    %21 = arith.mulf %0, %20 : vector<2x4x256xf32>
    %c0_9 = arith.constant 0 : index
    %c0_10 = arith.constant 0 : index
    %c0_11 = arith.constant 0 : index
    %22 = vector.load %arg4[%c0_9, %c0_10, %c0_11] : memref<2x4x256xf32, #tpu.memory_space<vmem>>, vector<2x4x256xf32>
    tpu.vector_store %arg4[%c0_9, %c0_10, %c0_11], %21 {strides = array<i32>} : memref<2x4x256xf32, #tpu.memory_space<vmem>>, vector<2x4x256xf32>,
    return
  }
  func.func @transform_0(%arg0: i32) -> (i32, i32, i32) {
    %c0_i32 = arith.constant 0 : i32
    %c0_i32_0 = arith.constant 0 : i32
    %c0_i32_1 = arith.constant 0 : i32
    return %arg0, %c0_i32, %c0_i32_0 : i32, i32, i32
  }
  func.func @transform_1(%arg0: i32) -> (i32, i32) {
    %c0_i32 = arith.constant 0 : i32
    %c0_i32_0 = arith.constant 0 : i32
    %c0_i32_1 = arith.constant 0 : i32
    return %c0_i32, %c0_i32_0 : i32, i32
  }
  func.func @transform_2(%arg0: i32) -> (i32, i32) {
    %c0_i32 = arith.constant 0 : i32
    %c0_i32_0 = arith.constant 0 : i32
    %c0_i32_1 = arith.constant 0 : i32
    return %c0_i32, %c0_i32_0 : i32, i32
  }
  func.func @transform_3(%arg0: i32) -> (i32, i32, i32) {
    %c0_i32 = arith.constant 0 : i32
    %c0_i32_0 = arith.constant 0 : i32
    %c0_i32_1 = arith.constant 0 : i32
    return %arg0, %c0_i32, %c0_i32_0 : i32, i32, i32
  }
}

</mosaic_0001>

<llo_original>
// kernel: tpu_custom_call.1
$region0: #{tpu_custom_call.1}
  #allocation0 [shape = 'u32[]', space=smem, size = 0x4, offset = 0x4, fixed_abs, tag = 'smem constant byte address 0x4 - core index']
  #allocation1 [shape = 'u32[144,128]{1,0:T(1,128)}', space=vmem, size = 0x12000, scoped, tag = 'internal scratch']
  %s0 = inlined_call_operand.hbm [shape: f32[2,4,256], index: 0, kind: input, shape index: {}]
  %s1 = inlined_call_operand.hbm [shape: f32[4,4], index: 1, kind: input, shape index: {}]
  %s2 = inlined_call_operand.vmem [shape: f32[1,4], index: 2, kind: input, shape index: {}]
  %s3 = inlined_call_operand.hbm [shape: f32[2,4,256], index: 3, kind: output, shape index: {}]
  %s4 = sld [smem:[#allocation0]]
  $region30: #{tpu_custom_call.1} parent=0
    _
  %s6 = ssub.s32 1, %s4
  %s7 = scalar_select 0, %s6, %s4
  $region1: #{tpu_custom_call.1} parent=0
    #allocation2 [shape = 'u8[8192]{0}', space=vmem, size = 0x2000, scoped, tag = 'input window, operand 0, single buffered']
    #allocation3 [shape = 's32[1]{0}', space=sflag, size = 0x4, scoped, tag = 'scoped memory for tpu_custom_call.1']
    #allocation4 [shape = 's32[1]{0}', space=sflag, size = 0x4, scoped, tag = 'scoped memory for tpu_custom_call.1']
    #allocation5 [shape = 'u8[2048]{0}', space=vmem, size = 0x800, scoped, tag = 'input window, operand 1, single buffered']
    #allocation6 [shape = 's32[1]{0}', space=sflag, size = 0x4, scoped, tag = 'scoped memory for tpu_custom_call.1']
    #allocation7 [shape = 'u8[8192]{0}', space=vmem, size = 0x2000, scoped, tag = 'output window, operand 0, single buffered']
    %8 = vsyncpa [#allocation3], 0
    %9 = vsyncpa [#allocation6], 0
    %10 = vsyncpa [#allocation4], 0
    // Predicated region
    $region2: #{tpu_custom_call.1} parent=1 // pred_check
      _
    $region3: #{tpu_custom_call.1} parent=1 // pred_check_branch
      %12 = sbr.rel (0) target = $region5
    $region4: #{tpu_custom_call.1} parent=1 // pred_region
      %s14 = ssub.s32 256, 256
      %15 = vsyncadd [#allocation3], %s14
      %s16 = sshll.u32 [#allocation2], 4
      %s17 = int_to_ptr.vmem [resolvable:$true] %s16
      %22 = dma.hbm_to_vmem [thread:$0]  %s0, 256, %s17, [#allocation3], 128, 128, 8
    $region5: #{tpu_custom_call.1} parent=1 // pred_fallthru
      _
    // Predicated region
    $region6: #{tpu_custom_call.1} parent=1 // pred_check
      _
    $region7: #{tpu_custom_call.1} parent=1 // pred_check_branch
      %24 = sbr.rel (0) target = $region9
    $region8: #{tpu_custom_call.1} parent=1 // pred_region
      %s26 = ssub.s32 64, 64
      %27 = vsyncadd [#allocation6], %s26
      %s29 = sshll.u32 [#allocation5], 4
      %s30 = int_to_ptr.vmem [resolvable:$true] %s29
      %32 = dma.hbm_to_vmem [thread:$0]  %s1, 64, %s30, [#allocation6]
    $region9: #{tpu_custom_call.1} parent=1 // pred_fallthru
      _
    // Predicated region
    $region10: #{tpu_custom_call.1} parent=1 // pred_check
      _
    $region11: #{tpu_custom_call.1} parent=1 // pred_check_branch
      %34 = sbr.rel (0) target = $region13
    $region12: #{tpu_custom_call.1} parent=1 // pred_region
      _
    $region13: #{tpu_custom_call.1} parent=1 // pred_fallthru
      _
    // Predicated region
    $region14: #{tpu_custom_call.1} parent=1 // pred_check
      _
    $region15: #{tpu_custom_call.1} parent=1 // pred_check_branch
      %36 = sbr.rel (0) target = $region17
    $region16: #{tpu_custom_call.1} parent=1 // pred_region
      %37 = dma.done [#allocation3], 256
    $region17: #{tpu_custom_call.1} parent=1 // pred_fallthru
      _
    // Predicated region
    $region18: #{tpu_custom_call.1} parent=1 // pred_check
      _
    $region19: #{tpu_custom_call.1} parent=1 // pred_check_branch
      %39 = sbr.rel (0) target = $region21
    $region20: #{tpu_custom_call.1} parent=1 // pred_region
      %40 = dma.done [#allocation6], 64
    $region21: #{tpu_custom_call.1} parent=1 // pred_fallthru
      _
    %v41 = vld [vmem:[#allocation2] sm:$0xff]
    %v42 = vld [vmem:[#allocation2 + $0x8] sm:$0xff]
    %v45 = vcombine.high %v41, %v41
    %v46 = vcombine.high %v42, %v42
    %vm49 = vcmask 1043456
    %v50 = vsel %vm49, %v41, 0.0
    %v51 = vsel %vm49, %v45, 0.0
    %v52 = vadd.f32 %v50, %v51
    %53 = vadd.xlane.f32.xlu0 %v52
    %v54 = vpop.xlane.xlu0 %53
    %v55 = vsel %vm49, %v42, 0.0
    %v56 = vsel %vm49, %v46, 0.0
    %v57 = vadd.f32 %v55, %v56
    %58 = vadd.xlane.f32.xlu0 %v57
    %v59 = vpop.xlane.xlu0 %58
    %v60 = vmul.f32 %v54, 0.00390625
    %v61 = vmul.f32 %v59, 0.00390625
    %v62 = vld [vmem:[#allocation5] sm:$0xf]
    %v64 = vlaneseq
    %v65 = vshrl.u32 %v64, 7
    %v66 = vsub.s32 0, %v65
    %v67 = vrot.slane %v62, %v66
    %69 = vbcast.lane.b32.xlu0 %v67, 256
    %v70 = vpop.permute.xlu0 %69
    %v71 = vlaneseq
    %v72 = vshrl.u32 %v71, 7
    %v73 = vsub.s32 1, %v72
    %v74 = vrot.slane %v62, %v73
    %76 = vbcast.lane.b32.xlu0 %v74, 256
    %v77 = vpop.permute.xlu0 %76
    %v78 = vlaneseq
    %v79 = vshrl.u32 %v78, 7
    %v80 = vsub.s32 2, %v79
    %v81 = vrot.slane %v62, %v80
    %83 = vbcast.lane.b32.xlu0 %v81, 256
    %v84 = vpop.permute.xlu0 %83
    %v85 = vlaneseq
    %v86 = vshrl.u32 %v85, 7
    %v87 = vsub.s32 3, %v86
    %v88 = vrot.slane %v62, %v87
    %90 = vbcast.lane.b32.xlu0 %v88, 256
    %v91 = vpop.permute.xlu0 %90
    %v96 = vmul.f32 %v60, %v70
    %v97 = vmul.f32 %v60, %v77
    %v98 = vmul.f32 %v60, %v84
    %v99 = vmul.f32 %v60, %v91
    %v100 = vmul.f32 %v61, %v70
    %v101 = vmul.f32 %v61, %v77
    %v102 = vmul.f32 %v61, %v84
    %v103 = vmul.f32 %v61, %v91
    %112 = vset.pattern.permute.xlu0 0
    %113 = vperm.xlu0 %112, %v96
    %v114 = vpop.permute.xlu0 %113
    %115 = vset.pattern.permute.xlu0 0
    %116 = vperm.xlu0 %115, %v97
    %v117 = vpop.permute.xlu0 %116
    %118 = vset.pattern.permute.xlu0 0
    %119 = vperm.xlu0 %118, %v98
    %v120 = vpop.permute.xlu0 %119
    %121 = vset.pattern.permute.xlu0 0
    %122 = vperm.xlu0 %121, %v99
    %v123 = vpop.permute.xlu0 %122
    %124 = vset.pattern.permute.xlu0 0
    %125 = vperm.xlu0 %124, %v100
    %v126 = vpop.permute.xlu0 %125
    %127 = vset.pattern.permute.xlu0 0
    %128 = vperm.xlu0 %127, %v101
    %v129 = vpop.permute.xlu0 %128
    %130 = vset.pattern.permute.xlu0 0
    %131 = vperm.xlu0 %130, %v102
    %v132 = vpop.permute.xlu0 %131
    %133 = vset.pattern.permute.xlu0 0
    %134 = vperm.xlu0 %133, %v103
    %v135 = vpop.permute.xlu0 %134
    %v136 = vlaneseq
    %v137 = vand.u32 %v136, 127
    %v138 = vlaneseq
    %v139 = vshrl.u32 %v138, 7
    %v140 = vsub.s32 %v137, %v139
    %v141 = vrot.slane %v114, %v140
    %v142 = vlaneseq
    %v143 = vshrl.u32 %v142, 7
    %v144 = vsub.s32 %v137, %v143
    %v145 = vrot.slane %v117, %v144
    %v146 = vlaneseq
    %v147 = vshrl.u32 %v146, 7
    %v148 = vsub.s32 %v137, %v147
    %v149 = vrot.slane %v120, %v148
    %v150 = vlaneseq
    %v151 = vshrl.u32 %v150, 7
    %v152 = vsub.s32 %v137, %v151
    %v153 = vrot.slane %v123, %v152
    %v154 = vlaneseq
    %v155 = vshrl.u32 %v154, 7
    %v156 = vsub.s32 %v137, %v155
    %v157 = vrot.slane %v126, %v156
    %v158 = vlaneseq
    %v159 = vshrl.u32 %v158, 7
    %v160 = vsub.s32 %v137, %v159
    %v161 = vrot.slane %v129, %v160
    %v162 = vlaneseq
    %v163 = vshrl.u32 %v162, 7
    %v164 = vsub.s32 %v137, %v163
    %v165 = vrot.slane %v132, %v164
    %v166 = vlaneseq
    %v167 = vshrl.u32 %v166, 7
    %v168 = vsub.s32 %v137, %v167
    %v169 = vrot.slane %v135, %v168
    %vm170 = vcmask 1041409
    %v171 = vsel %vm170, %v145, %v141
    %vm172 = vcmask 1042434
    %v173 = vsel %vm172, %v149, %v171
    %vm174 = vcmask 1043459
    %v175 = vsel %vm174, %v153, %v173
    %v176 = vsel %vm170, %v161, %v157
    %v177 = vsel %vm172, %v165, %v176
    %v178 = vsel %vm174, %v169, %v177
    %vm181 = vcmask 27648
    %v182 = vsel %vm181, %v175, 0.0
    %183 = vadd.xlane.f32.xlu0 %v182
    %v184 = vpop.xlane.xlu0 %183
    %v185 = vsel %vm181, %v178, 0.0
    %186 = vadd.xlane.f32.xlu0 %v185
    %v187 = vpop.xlane.xlu0 %186
    %v188 = vld [vmem:[%s2] sm:$0x1]
    %v190 = vlaneseq
    %v191 = vshrl.u32 %v190, 7
    %v192 = vsub.s32 0, %v191
    %v193 = vrot.slane %v188, %v192
    %195 = vbcast.lane.b32.xlu0 %v193, 256
    %v196 = vpop.permute.xlu0 %195
    %v198 = vadd.f32 %v184, %v196
    %v199 = vadd.f32 %v187, %v196
    %v200 = vxor.u32 %v198, 2147483648
    %v201 = vxor.u32 %v199, 2147483648
    %v202 = vmul.f32 %v200, 1.442695
    %v203 = vpow.pop %v202
    %v204 = vmul.f32 %v201, 1.442695
    %v205 = vpow.pop %v204
    %v206 = vadd.f32 %v203, 1.0
    %v207 = vadd.f32 %v205, 1.0
    %v208 = vrcp.pop %v206
    %v209 = vmul.f32 1.0, %v208
    %v210 = vrcp.pop %v207
    %v211 = vmul.f32 1.0, %v210
    %213 = vset.pattern.permute.xlu0 0
    %214 = vperm.xlu0 %213, %v209
    %v215 = vpop.permute.xlu0 %214
    %217 = vset.pattern.permute.xlu0 0
    %218 = vperm.xlu0 %217, %v211
    %v219 = vpop.permute.xlu0 %218
    %v221 = vunpack.c.l.s4 839922192
    %v222 = vunpack.c.0.s8 %v221
    %v223 = vlaneseq
    %v224 = vshrl.u32 %v223, 7
    %v225 = vsub.s32 %v222, %v224
    %v226 = vrot.slane %v215, %v225
    %v228 = vunpack.c.l.s4 839922192
    %v229 = vunpack.c.0.s8 %v228
    %v230 = vlaneseq
    %v231 = vshrl.u32 %v230, 7
    %v232 = vsub.s32 %v229, %v231
    %v233 = vrot.slane %v219, %v232
    %v236 = vmul.f32 %v41, %v226
    %v237 = vmul.f32 %v42, %v233
    %238 = vst [vmem:[#allocation7] sm:$0xff] %v236
    %239 = vst [vmem:[#allocation7 + $0x8] sm:$0xff] %v237
    // Predicated region
    $region22: #{tpu_custom_call.1} parent=1 // pred_check
      _
    $region23: #{tpu_custom_call.1} parent=1 // pred_check_branch
      %241 = sbr.rel (0) target = $region25
    $region24: #{tpu_custom_call.1} parent=1 // pred_region
      %s243 = ssub.s32 256, 256
      %244 = vsyncadd [#allocation4], %s243
      %s245 = sshll.u32 [#allocation7], 4
      %s246 = int_to_ptr.vmem [resolvable:$true] %s245
      %251 = dma.vmem_to_hbm [thread:$0]  %s246, 256, %s3, [#allocation4], 128, 128, 8
    $region25: #{tpu_custom_call.1} parent=1 // pred_fallthru
      _
    // Predicated region
    $region26: #{tpu_custom_call.1} parent=1 // pred_check
      _
    $region27: #{tpu_custom_call.1} parent=1 // pred_check_branch
      %253 = sbr.rel (0) target = $region29
    $region28: #{tpu_custom_call.1} parent=1 // pred_region
      %254 = dma.done [#allocation4], 256
    $region29: #{tpu_custom_call.1} parent=1 // pred_fallthru
      _
    %255 = vsyncpa [#allocation3], 1
    %256 = vsyncpa [#allocation6], 1
    %257 = vsyncpa [#allocation4], 1

</llo_original>
